<compile_context>
chip_gen: v7x
topology: tpu7x:2x2x1
jax: 0.10.0
libtpu: 0.0.40
codegen_flags: <defaults>
</compile_context>

<pallas_src>
import functools

import jax
import jax.numpy as jnp
from jax import lax
from jax.experimental import pallas as pl
from jax.experimental.pallas import tpu as pltpu


def _round_up(v, m):
    return ((v + m - 1) // m) * m


def _channel_attention_kernel(x_ref, w1_ref, b1_ref, w2_ref, b2_ref,
                              o_ref, sum_acc, max_acc,
                              *, s_true, tile_s):
    k = pl.program_id(1)

    # All of these are static Python ints at trace time.
    num_k = (s_true + tile_s - 1) // tile_s
    chunks_per_tile = tile_s // 128
    s_rem = s_true - (num_k - 1) * tile_s      # valid lanes in the last tile
    tail_full = s_rem // 128                   # fully-valid chunks in last tile
    tail_part = s_rem % 128                    # lanes of the partial chunk (0 => none)

    in_is_f32 = x_ref.dtype == jnp.float32

    @pl.when(k == 0)
    def _init():
        sum_acc[...] = jnp.zeros(sum_acc.shape, sum_acc.dtype)
        max_acc[...] = jnp.full(max_acc.shape, -jnp.inf, max_acc.dtype)

    def load_chunk(j):
        start = pl.multiple_of(j * 128, 128)
        c = x_ref[:, :, pl.ds(start, 128)]               # (1, C, 128)
        return c if in_is_f32 else c.astype(jnp.float32)

    def accum_chunks(n_chunks, s0, m0):
        # vreg-resident accumulation over n_chunks 128-lane chunks.
        if n_chunks == 0:
            return s0, m0

        def body(j, carry):
            s, m = carry
            c = load_chunk(j)
            return s + c, jnp.maximum(m, c)

        return lax.fori_loop(0, n_chunks, body, (s0, m0),
                             unroll=min(8, n_chunks))

    # ---- Steady-state tiles: fully valid, zero masking. --------------------
    if num_k > 1:
        @pl.when(k < num_k - 1)
        def _steady():
            s, m = accum_chunks(chunks_per_tile, sum_acc[...], max_acc[...])
            sum_acc[...] = s
            max_acc[...] = m

    # ---- Last tile: touch only chunks overlapping valid data + finalize. ---
    @pl.when(k == num_k - 1)
    def _tail():
        s, m = accum_chunks(tail_full, sum_acc[...], max_acc[...])
        if tail_part:
            c = load_chunk(tail_full)
            lane = lax.broadcasted_iota(jnp.int32, c.shape, 2)
            valid = lane < tail_part
            s = s + jnp.where(valid, c, 0.0)
            m = jnp.maximum(m, jnp.where(valid, c, -jnp.inf))

        # Single cross-lane reduce, then the fused (avg | max) MLP.
        avg = jnp.sum(s, axis=-1) * (1.0 / s_true)        # (1, C)
        mx = jnp.max(m, axis=-1)                          # (1, C)
        p = jnp.concatenate([avg, mx], axis=0)            # (2, C)
        h = jnp.dot(p, w1_ref[...],
                    preferred_element_type=jnp.float32) + b1_ref[...]
        h = jnp.where(h > 0, h, 0.2 * h)                  # leaky_relu(0.2)
        y = jnp.dot(h, w2_ref[...],
                    preferred_element_type=jnp.float32) + b2_ref[...]
        sg = jax.nn.sigmoid(y)                            # (2, C)
        out = sg[0:1, :] + sg[1:2, :]                     # (1, C)
        o_ref[...] = out[:, None, :].astype(o_ref.dtype)  # (1, 1, C)


def channel_attention(x, w1_t, b1, w2_t, b2, *,
                      target_block_bytes=2 * 1024 * 1024):
    """x: (N, C, D, H, W). Returns (N, C, 1, 1, 1)."""
    N, C, D, H, W = x.shape
    S = D * H * W
    xs = x.reshape(N, C, S)

    # Lane-dense S tile sized by bytes (not a fixed lane count): each grid
    # step streams ~target_block_bytes of x, amortizing per-step overhead.
    itemsize = jnp.dtype(x.dtype).itemsize
    lanes = max(target_block_bytes // max(C * itemsize, 1), 128)
    ts = min(_round_up(lanes, 128), _round_up(S, 128))
    num_k = pl.cdiv(S, ts)

    kernel = functools.partial(_channel_attention_kernel, s_true=S, tile_s=ts)

    grid_spec = pltpu.PrefetchScalarGridSpec(
        num_scalar_prefetch=0,
        grid=(N, num_k),
        in_specs=[
            pl.BlockSpec((1, C, ts), lambda n, k: (n, 0, k)),   # streamed x
            pl.BlockSpec(w1_t.shape, lambda n, k: (0, 0)),      # resident weights
            pl.BlockSpec((1, b1.shape[0]), lambda n, k: (0, 0)),
            pl.BlockSpec(w2_t.shape, lambda n, k: (0, 0)),
            pl.BlockSpec((1, b2.shape[0]), lambda n, k: (0, 0)),
        ],
        out_specs=pl.BlockSpec((1, 1, C), lambda n, k: (n, 0, 0)),
        scratch_shapes=[
            pltpu.VMEM((1, C, 128), jnp.float32),   # running sum
            pltpu.VMEM((1, C, 128), jnp.float32),   # running max
        ],
    )

    # Footprint: 2 (double-buffer) * C*ts*itemsize (~4 MiB at defaults) plus
    # tiny weights/accumulators; 32 MiB limit is safe on v5e/v6e/v7x and
    # leaves headroom over the v5e 16 MiB scoped default.
    out = pl.pallas_call(
        kernel,
        out_shape=jax.ShapeDtypeStruct((N, 1, C), x.dtype),
        grid_spec=grid_spec,
        compiler_params=pltpu.CompilerParams(
            dimension_semantics=("parallel", "arbitrary"),
            vmem_limit_bytes=32 * 1024 * 1024),
    )(xs, w1_t, b1.reshape(1, -1), w2_t, b2.reshape(1, -1))

    return out.reshape(N, C, 1, 1, 1)


def channel_attention_ref(x, w1_t, b1, w2_t, b2):
    """Pure-JAX reference mirroring the PyTorch forward."""
    N, C = x.shape[:2]
    xs = x.reshape(N, C, -1)
    avg = jnp.mean(xs, axis=-1)
    mx = jnp.max(xs, axis=-1)

    def mlp(p):
        h = p @ w1_t + b1
        h = jnp.where(h > 0, h, 0.2 * h)
        y = h @ w2_t + b2
        return jax.nn.sigmoid(y)

    return (mlp(avg) + mlp(mx)).reshape(N, C, 1, 1, 1)


if __name__ == "__main__":
    key = jax.random.PRNGKey(0)
    k_x, k_w1, k_b1, k_w2, k_b2 = jax.random.split(key, 5)

    N, C, I = 2, 8, 4          # input_channels=8, internal_neurons=4
    D, H, W = 6, 10, 12        # S = 720

    x = jax.random.normal(k_x, (N, C, D, H, W), dtype=jnp.float32)

    # PyTorch fc1.weight is (I, C, 1, 1, 1); we store the transposed
    # channel-mixing matrices directly.
    w1_t = 0.1 * jax.random.normal(k_w1, (C, I), dtype=jnp.float32)  # fc1.weight.T
    b1 = 0.1 * jax.random.normal(k_b1, (I,), dtype=jnp.float32)
    w2_t = 0.1 * jax.random.normal(k_w2, (I, C), dtype=jnp.float32)  # fc2.weight.T
    b2 = 0.1 * jax.random.normal(k_b2, (C,), dtype=jnp.float32)

    ref = channel_attention_ref(x, w1_t, b1, w2_t, b2)

    # Case 1: default byte-sized tile (single tile, masked partial tail chunk).
    out = jax.block_until_ready(channel_attention(x, w1_t, b1, w2_t, b2))
    assert out.shape == (N, C, 1, 1, 1)
    assert jnp.allclose(out, ref, atol=1e-5, rtol=1e-5), "mismatch (single tile)"

    # Case 2: force multiple S tiles -> exercises steady path + accumulator
    # carry across grid steps + masked tail (ts=256, num_k=3, tail=208 lanes).
    out2 = jax.block_until_ready(
        channel_attention(x, w1_t, b1, w2_t, b2, target_block_bytes=8192))
    assert jnp.allclose(out2, ref, atol=1e-5, rtol=1e-5), "mismatch (multi tile)"

    # Case 3: S an exact multiple of 128 -> fully unmasked path.
    x3 = jax.random.normal(jax.random.PRNGKey(1), (N, C, 4, 8, 8), dtype=jnp.float32)
    out3 = jax.block_until_ready(channel_attention(x3, w1_t, b1, w2_t, b2))
    ref3 = channel_attention_ref(x3, w1_t, b1, w2_t, b2)
    assert jnp.allclose(out3, ref3, atol=1e-5, rtol=1e-5), "mismatch (exact path)"

    print("KERNEL_OK")
</pallas_src>

<mosaic_0001>
module attributes {stable_mosaic.version = 11 : i64} {
  func.func @_channel_attention_kernel(%arg0: i32, %arg1: i32, %arg2: memref<1x8x768xf32, #tpu.memory_space<vmem>>, %arg3: memref<8x4xf32, #tpu.memory_space<vmem>>, %arg4: memref<1x4xf32, #tpu.memory_space<vmem>>, %arg5: memref<4x8xf32, #tpu.memory_space<vmem>>, %arg6: memref<1x8xf32, #tpu.memory_space<vmem>>, %arg7: memref<1x1x8xf32, #tpu.memory_space<vmem>>, %arg8: memref<1x8x128xf32, #tpu.memory_space<vmem>>, %arg9: memref<1x8x128xf32, #tpu.memory_space<vmem>>) attributes {dimension_semantics = [#tpu.dimension_semantics<parallel>, #tpu.dimension_semantics<arbitrary>], iteration_bounds = array<i64: 2, 1>, scalar_prefetch = 0 : i64, scratch_operands = 2 : i64, tpu.core_type = #tpu.core_type<tc>, window_params = [{transform_indices = @transform_0, window_bounds = array<i64: 1, 8, 768>}, {pipeline_mode = #tpu.pipeline_mode<synchronous>, transform_indices = @transform_1, window_bounds = array<i64: 8, 4>}, {pipeline_mode = #tpu.pipeline_mode<synchronous>, transform_indices = @transform_2, window_bounds = array<i64: 1, 4>}, {pipeline_mode = #tpu.pipeline_mode<synchronous>, transform_indices = @transform_3, window_bounds = array<i64: 4, 8>}, {pipeline_mode = #tpu.pipeline_mode<synchronous>, transform_indices = @transform_4, window_bounds = array<i64: 1, 8>}, {transform_indices = @transform_5, window_bounds = array<i64: 1, 1, 8>}]} {
    %c0_i32 = arith.constant 0 : i32
    %0 = arith.cmpi eq, %arg1, %c0_i32 : i32
    %1 = arith.extui %0 : i1 to i32
    %c0_i32_0 = arith.constant 0 : i32
    %2 = arith.cmpi ne, %1, %c0_i32_0 : i32
    scf.if %2 {
      %cst = arith.constant 0.000000e+00 : f32
      %6 = vector.broadcast %cst : f32 to vector<1x8x128xf32>
      %c0 = arith.constant 0 : index
      %c0_3 = arith.constant 0 : index
      %c0_4 = arith.constant 0 : index
      %7 = vector.load %arg8[%c0, %c0_3, %c0_4] : memref<1x8x128xf32, #tpu.memory_space<vmem>>, vector<1x8x128xf32>
      tpu.vector_store %arg8[%c0, %c0_3, %c0_4], %6 {strides = array<i32>} : memref<1x8x128xf32, #tpu.memory_space<vmem>>, vector<1x8x128xf32>,
      %cst_5 = arith.constant 0xFF800000 : f32
      %8 = vector.broadcast %cst_5 : f32 to vector<1x8x128xf32>
      %c0_6 = arith.constant 0 : index
      %c0_7 = arith.constant 0 : index
      %c0_8 = arith.constant 0 : index
      %9 = vector.load %arg9[%c0_6, %c0_7, %c0_8] : memref<1x8x128xf32, #tpu.memory_space<vmem>>, vector<1x8x128xf32>
      tpu.vector_store %arg9[%c0_6, %c0_7, %c0_8], %8 {strides = array<i32>} : memref<1x8x128xf32, #tpu.memory_space<vmem>>, vector<1x8x128xf32>,
    } else {
    }
    %c0_i32_1 = arith.constant 0 : i32
    %3 = arith.cmpi eq, %arg1, %c0_i32_1 : i32
    %4 = arith.extui %3 : i1 to i32
    %c0_i32_2 = arith.constant 0 : i32
    %5 = arith.cmpi ne, %4, %c0_i32_2 : i32
    scf.if %5 {
      %c0 = arith.constant 0 : index
      %c0_3 = arith.constant 0 : index
      %c0_4 = arith.constant 0 : index
      %6 = vector.load %arg8[%c0, %c0_3, %c0_4] : memref<1x8x128xf32, #tpu.memory_space<vmem>>, vector<1x8x128xf32>
      %c0_5 = arith.constant 0 : index
      %c0_6 = arith.constant 0 : index
      %c0_7 = arith.constant 0 : index
      %7 = vector.load %arg9[%c0_5, %c0_6, %c0_7] : memref<1x8x128xf32, #tpu.memory_space<vmem>>, vector<1x8x128xf32>
      %c0_i32_8 = arith.constant 0 : i32
      %c128_i32 = arith.constant 128 : i32
      %8 = arith.muli %c0_i32_8, %c128_i32 : i32
      %9 = tpu.assume_multiple %8, 128 : i32
      %c0_9 = arith.constant 0 : index
      %c0_10 = arith.constant 0 : index
      %10 = arith.index_cast %9 : i32 to index
      %11 = vector.load %arg2[%c0_9, %c0_10, %10] : memref<1x8x768xf32, #tpu.memory_space<vmem>>, vector<1x8x128xf32>
      %12 = arith.addf %6, %11 : vector<1x8x128xf32>
      %13 = arith.maximumf %7, %11 : vector<1x8x128xf32>
      %c1_i32 = arith.constant 1 : i32
      %c128_i32_11 = arith.constant 128 : i32
      %14 = arith.muli %c1_i32, %c128_i32_11 : i32
      %15 = tpu.assume_multiple %14, 128 : i32
      %c0_12 = arith.constant 0 : index
      %c0_13 = arith.constant 0 : index
      %16 = arith.index_cast %15 : i32 to index
      %17 = vector.load %arg2[%c0_12, %c0_13, %16] : memref<1x8x768xf32, #tpu.memory_space<vmem>>, vector<1x8x128xf32>
      %18 = arith.addf %12, %17 : vector<1x8x128xf32>
      %19 = arith.maximumf %13, %17 : vector<1x8x128xf32>
      %c2_i32 = arith.constant 2 : i32
      %c128_i32_14 = arith.constant 128 : i32
      %20 = arith.muli %c2_i32, %c128_i32_14 : i32
      %21 = tpu.assume_multiple %20, 128 : i32
      %c0_15 = arith.constant 0 : index
      %c0_16 = arith.constant 0 : index
      %22 = arith.index_cast %21 : i32 to index
      %23 = vector.load %arg2[%c0_15, %c0_16, %22] : memref<1x8x768xf32, #tpu.memory_space<vmem>>, vector<1x8x128xf32>
      %24 = arith.addf %18, %23 : vector<1x8x128xf32>
      %25 = arith.maximumf %19, %23 : vector<1x8x128xf32>
      %c3_i32 = arith.constant 3 : i32
      %c128_i32_17 = arith.constant 128 : i32
      %26 = arith.muli %c3_i32, %c128_i32_17 : i32
      %27 = tpu.assume_multiple %26, 128 : i32
      %c0_18 = arith.constant 0 : index
      %c0_19 = arith.constant 0 : index
      %28 = arith.index_cast %27 : i32 to index
      %29 = vector.load %arg2[%c0_18, %c0_19, %28] : memref<1x8x768xf32, #tpu.memory_space<vmem>>, vector<1x8x128xf32>
      %30 = arith.addf %24, %29 : vector<1x8x128xf32>
      %31 = arith.maximumf %25, %29 : vector<1x8x128xf32>
      %c4_i32 = arith.constant 4 : i32
      %c128_i32_20 = arith.constant 128 : i32
      %32 = arith.muli %c4_i32, %c128_i32_20 : i32
      %33 = tpu.assume_multiple %32, 128 : i32
      %c0_21 = arith.constant 0 : index
      %c0_22 = arith.constant 0 : index
      %34 = arith.index_cast %33 : i32 to index
      %35 = vector.load %arg2[%c0_21, %c0_22, %34] : memref<1x8x768xf32, #tpu.memory_space<vmem>>, vector<1x8x128xf32>
      %36 = arith.addf %30, %35 : vector<1x8x128xf32>
      %37 = arith.maximumf %31, %35 : vector<1x8x128xf32>
      %c5_i32 = arith.constant 5 : i32
      %c640_i32 = arith.constant 640 : i32
      %38 = tpu.assume_multiple %c640_i32, 128 : i32
      %c0_23 = arith.constant 0 : index
      %c0_24 = arith.constant 0 : index
      %39 = arith.index_cast %38 : i32 to index
      %40 = vector.load %arg2[%c0_23, %c0_24, %39] : memref<1x8x768xf32, #tpu.memory_space<vmem>>, vector<1x8x128xf32>
      %41 = tpu.iota {dimensions = array<i32: 2>} : vector<1x8x128xi32>
      %c80_i32 = arith.constant 80 : i32
      %42 = vector.broadcast %c80_i32 : i32 to vector<1x8x128xi32>
      %43 = arith.cmpi slt, %41, %42 : vector<1x8x128xi32>
      %cst = arith.constant 0.000000e+00 : f32
      %44 = vector.broadcast %cst : f32 to vector<1x8x128xf32>
      %45 = arith.select %43, %40, %44 : vector<1x8x128xi1>, vector<1x8x128xf32>
      %46 = arith.addf %36, %45 : vector<1x8x128xf32>
      %cst_25 = arith.constant 0xFF800000 : f32
      %47 = vector.broadcast %cst_25 : f32 to vector<1x8x128xf32>
      %48 = arith.select %43, %40, %47 : vector<1x8x128xi1>, vector<1x8x128xf32>
      %49 = arith.maximumf %37, %48 : vector<1x8x128xf32>
      %cst_26 = arith.constant dense<0.000000e+00> : vector<1x8xf32>
      %50 = vector.multi_reduction <add>, %46, %cst_26 [2] : vector<1x8x128xf32> to vector<1x8xf32>
      %cst_27 = arith.constant 0.00138888892 : f32
      %51 = vector.broadcast %cst_27 : f32 to vector<1x8xf32>
      %52 = arith.mulf %50, %51 : vector<1x8xf32>
      %cst_28 = arith.constant dense<0xFF800000> : vector<1x8xf32>
      %53 = vector.multi_reduction <maximumf>, %49, %cst_28 [2] : vector<1x8x128xf32> to vector<1x8xf32>
      %54 = tpu.concatenate %52, %53 in 0 : vector<1x8xf32>, vector<1x8xf32> -> vector<2x8xf32>
      %c0_29 = arith.constant 0 : index
      %c0_30 = arith.constant 0 : index
      %55 = vector.load %arg3[%c0_29, %c0_30] : memref<8x4xf32, #tpu.memory_space<vmem>>, vector<8x4xf32>
      %cst_31 = arith.constant dense<0.000000e+00> : vector<2x4xf32>
      %56 = tpu.matmul %54, %55, %cst_31 {dimension_numbers = #tpu.dot_dimension_numbers<[1], [0], [0], [1], [0, 0, 1, 1], [], []>} : vector<2x8xf32>, vector<8x4xf32>, vector<2x4xf32> -> vector<2x4xf32>
      %c0_32 = arith.constant 0 : index
      %c0_33 = arith.constant 0 : index
      %57 = vector.load %arg4[%c0_32, %c0_33] : memref<1x4xf32, #tpu.memory_space<vmem>>, vector<1x4xf32>
      %58 = vector.broadcast %57 : vector<1x4xf32> to vector<2x4xf32>
      %59 = arith.addf %56, %58 : vector<2x4xf32>
      %cst_34 = arith.constant 0.000000e+00 : f32
      %60 = vector.broadcast %cst_34 : f32 to vector<2x4xf32>
      %61 = arith.cmpf ogt, %59, %60 : vector<2x4xf32>
      %cst_35 = arith.constant 2.000000e-01 : f32
      %62 = vector.broadcast %cst_35 : f32 to vector<2x4xf32>
      %63 = arith.mulf %62, %59 : vector<2x4xf32>
      %64 = arith.select %61, %59, %63 : vector<2x4xi1>, vector<2x4xf32>
      %c0_36 = arith.constant 0 : index
      %c0_37 = arith.constant 0 : index
      %65 = vector.load %arg5[%c0_36, %c0_37] : memref<4x8xf32, #tpu.memory_space<vmem>>, vector<4x8xf32>
      %cst_38 = arith.constant dense<0.000000e+00> : vector<2x8xf32>
      %66 = tpu.matmul %64, %65, %cst_38 {dimension_numbers = #tpu.dot_dimension_numbers<[1], [0], [0], [1], [0, 0, 1, 1], [], []>} : vector<2x4xf32>, vector<4x8xf32>, vector<2x8xf32> -> vector<2x8xf32>
      %c0_39 = arith.constant 0 : index
      %c0_40 = arith.constant 0 : index
      %67 = vector.load %arg6[%c0_39, %c0_40] : memref<1x8xf32, #tpu.memory_space<vmem>>, vector<1x8xf32>
      %68 = vector.broadcast %67 : vector<1x8xf32> to vector<2x8xf32>
      %69 = arith.addf %66, %68 : vector<2x8xf32>
      %70 = arith.negf %69 : vector<2x8xf32>
      %71 = math.exp %70 : vector<2x8xf32>
      %cst_41 = arith.constant 1.000000e+00 : f32
      %72 = vector.broadcast %cst_41 : f32 to vector<2x8xf32>
      %73 = arith.addf %72, %71 : vector<2x8xf32>
      %74 = arith.divf %72, %73 : vector<2x8xf32>
      %75 = vector.extract_strided_slice %74 {offsets = [0, 0], sizes = [1, 8], strides = [1, 1]} : vector<2x8xf32> to vector<1x8xf32>
      %76 = vector.extract_strided_slice %74 {offsets = [1, 0], sizes = [1, 8], strides = [1, 1]} : vector<2x8xf32> to vector<1x8xf32>
      %77 = arith.addf %75, %76 : vector<1x8xf32>
      %78 = vector.shape_cast %77 : vector<1x8xf32> to vector<1x1x8xf32>
      %c0_42 = arith.constant 0 : index
      %c0_43 = arith.constant 0 : index
      %c0_44 = arith.constant 0 : index
      %79 = vector.load %arg7[%c0_42, %c0_43, %c0_44] : memref<1x1x8xf32, #tpu.memory_space<vmem>>, vector<1x1x8xf32>
      tpu.vector_store %arg7[%c0_42, %c0_43, %c0_44], %78 {strides = array<i32>} : memref<1x1x8xf32, #tpu.memory_space<vmem>>, vector<1x1x8xf32>,
    } else {
    }
    return
  }
  func.func @transform_0(%arg0: i32, %arg1: i32) -> (i32, i32, i32) {
    %c0_i32 = arith.constant 0 : i32
    %c0_i32_0 = arith.constant 0 : i32
    return %arg0, %c0_i32, %arg1 : i32, i32, i32
  }
  func.func @transform_1(%arg0: i32, %arg1: i32) -> (i32, i32) {
    %c0_i32 = arith.constant 0 : i32
    %c0_i32_0 = arith.constant 0 : i32
    %c0_i32_1 = arith.constant 0 : i32
    return %c0_i32, %c0_i32_0 : i32, i32
  }
  func.func @transform_2(%arg0: i32, %arg1: i32) -> (i32, i32) {
    %c0_i32 = arith.constant 0 : i32
    %c0_i32_0 = arith.constant 0 : i32
    %c0_i32_1 = arith.constant 0 : i32
    return %c0_i32, %c0_i32_0 : i32, i32
  }
  func.func @transform_3(%arg0: i32, %arg1: i32) -> (i32, i32) {
    %c0_i32 = arith.constant 0 : i32
    %c0_i32_0 = arith.constant 0 : i32
    %c0_i32_1 = arith.constant 0 : i32
    return %c0_i32, %c0_i32_0 : i32, i32
  }
  func.func @transform_4(%arg0: i32, %arg1: i32) -> (i32, i32) {
    %c0_i32 = arith.constant 0 : i32
    %c0_i32_0 = arith.constant 0 : i32
    %c0_i32_1 = arith.constant 0 : i32
    return %c0_i32, %c0_i32_0 : i32, i32
  }
  func.func @transform_5(%arg0: i32, %arg1: i32) -> (i32, i32, i32) {
    %c0_i32 = arith.constant 0 : i32
    %c0_i32_0 = arith.constant 0 : i32
    %c0_i32_1 = arith.constant 0 : i32
    return %arg0, %c0_i32, %c0_i32_0 : i32, i32, i32
  }
}

</mosaic_0001>

<llo_original>
// kernel: tpu_custom_call.1
$region0: #{tpu_custom_call.1}
  #allocation0 [shape = 'u32[]', space=smem, size = 0x4, offset = 0x4, fixed_abs, tag = 'smem constant byte address 0x4 - core index']
  #allocation1 [shape = 'u32[144,128]{1,0:T(1,128)}', space=vmem, size = 0x12000, scoped, tag = 'internal scratch']
  #allocation2 [shape = 'f32[1,8,128]{2,1,0:T(8,128)}', space=vmem, size = 0x1000, scoped, tag = 'scratch operand']
  #allocation3 [shape = 'f32[1,8,128]{2,1,0:T(8,128)}', space=vmem, size = 0x1000, scoped, tag = 'scratch operand']
  %s0 = inlined_call_operand.hbm [shape: f32[2,8,720], index: 0, kind: input, shape index: {}]
  %s1 = inlined_call_operand.vmem [shape: f32[8,4], index: 1, kind: input, shape index: {}]
  %s2 = inlined_call_operand.vmem [shape: f32[1,4], index: 2, kind: input, shape index: {}]
  %s3 = inlined_call_operand.vmem [shape: f32[4,8], index: 3, kind: input, shape index: {}]
  %s4 = inlined_call_operand.vmem [shape: f32[1,8], index: 4, kind: input, shape index: {}]
  %s5 = inlined_call_operand.hbm [shape: f32[2,1,8], index: 5, kind: output, shape index: {}]
  %s6 = sld [smem:[#allocation0]]
  $region61: #{tpu_custom_call.1} parent=0
    _
  %s8 = ssub.s32 1, %s6
  %s9 = scalar_select 0, %s8, %s6
  $region1: #{tpu_custom_call.1} parent=0
    #allocation4 [shape = 'u8[49152]{0}', space=vmem, size = 0xc000, scoped, tag = 'input window, operand 0']
    #allocation5 [shape = 's32[2]{0}', space=sflag, size = 0x8, scoped, tag = 'scoped memory for tpu_custom_call.1']
    #allocation6 [shape = 's32[2]{0}', space=sflag, size = 0x8, scoped, tag = 'scoped memory for tpu_custom_call.1']
    #allocation7 [shape = 'u8[1024]{0}', space=vmem, size = 0x400, scoped, tag = 'output window, operand 0']
    %10 = vsyncpa [#allocation5], 0
    %s11 = scalar_lea.sflag [#allocation5], 1
    %12 = vsyncpa %s11, 0
    %13 = vsyncpa [#allocation6], 0
    %s14 = scalar_lea.sflag [#allocation6], 1
    %15 = vsyncpa %s14, 0
    loop: start=0, step=1, limit=4
    $region2: #{tpu_custom_call.1} parent=1 // loop_pre_header
      _
    $region3: #{tpu_custom_call.1} parent=1 // loop_header
      %s17 = sphi 0, %s21
      %p18 = scmp.ge.s32.totalorder %s17, 4
      %s24 = sphi 0, %s36
      %s25 = sphi 0, %s32
      %s26 = sphi 0, %s24
      %s27 = sphi 0, %s25
      %s28 = sphi 0, %s26
      %s29 = sphi 0, %s27
      %s41 = sphi 0, %s43
      %s44 = sphi 0, %s41
      %s45 = sphi 0, %s44
      %s61 = sphi 0, %s45
      %s65 = sphi 0, %s65
      %s67 = sphi 0, %s65
      %s68 = sphi 0, %s67
      %s82 = sphi 0, %s68
      %s86 = sphi 0, %s86
      %s88 = sphi 0, %s86
      %s89 = sphi 0, %s88
      %s103 = sphi 0, %s89
      %s107 = sphi 0, %s107
      %s109 = sphi 0, %s107
      %s110 = sphi 0, %s109
      %s124 = sphi 0, %s110
      %s128 = sphi 0, %s128
      %s130 = sphi 0, %s128
      %s131 = sphi 0, %s130
      %s145 = sphi 0, %s131
      %s151 = sphi 0, %s153
      %s154 = sphi 0, %s151
      %s155 = sphi 0, %s154
      %s171 = sphi 0, %s155
    $region4: #{tpu_custom_call.1} parent=1 // loop_header_branch
      %20 = sbr.rel (%p18) target = $region8
    $region5: #{tpu_custom_call.1} parent=1 // loop_body
      %s22 = ssub.s32 %s17, 1
      %s23 = ssub.s32 %s17, 2
      %s30 = sadd.s32 1, %s25
      %p31 = scmp.ge.s32.totalorder %s30, 1
      %s32 = scalar_select %p31, 0, %s30
      %s33 = sadd.s32 1, %s24
      %s34 = scalar_select %p31, %s33, %s24
      %p35 = scmp.ge.s32.totalorder %s34, 2
      %s36 = scalar_select %p35, 0, %s34
      %s37 = ssub.s32 %s24, %s36
      %s38 = ssub.s32 %s25, %s32
      %s39 = sor.u32 %s37, %s38
      %p40 = scmp.eq.s32.totalorder %s39, 0
      %s42 = sadd.s32 %s41, 1
      %s43 = scalar_select %p40, %s41, %s42
      %p46 = pneg %p40
      %p47 = scmp.eq.s32.totalorder %s17, 1
      %p48 = por %p46, %p47
      %p49 = scmp.ne.s32.totalorder %s41, %s44
      %p50 = scmp.eq.s32.totalorder %s17, 0
      %p51 = por %p49, %p50
      %p52 = scmp.ne.s32.totalorder %s41, %s44
      %p53 = scmp.eq.s32.totalorder %s22, 1
      %p54 = por %p52, %p53
      %p55 = scmp.ne.s32.totalorder %s44, %s45
      %p56 = scmp.eq.s32.totalorder %s22, 0
      %p57 = por %p55, %p56
      %p58 = scmp.ne.s32.totalorder %s44, %s45
      %p59 = scmp.eq.s32.totalorder %s23, 1
      %p60 = por %p58, %p59
      %p62 = scmp.ne.s32.totalorder %s45, %s61
      %p63 = scmp.eq.s32.totalorder %s23, 0
      %p64 = por %p62, %p63
      %s66 = sadd.s32 %s65, 1
      %p69 = scmp.eq.s32.totalorder %s17, 1
      %p70 = scmp.ne.s32.totalorder %s65, %s67
      %p71 = scmp.eq.s32.totalorder %s17, 0
      %p72 = por %p70, %p71
      %p73 = scmp.ne.s32.totalorder %s65, %s67
      %p74 = scmp.eq.s32.totalorder %s22, 1
      %p75 = por %p73, %p74
      %p76 = scmp.ne.s32.totalorder %s67, %s68
      %p77 = scmp.eq.s32.totalorder %s22, 0
      %p78 = por %p76, %p77
      %p79 = scmp.ne.s32.totalorder %s67, %s68
      %p80 = scmp.eq.s32.totalorder %s23, 1
      %p81 = por %p79, %p80
      %p83 = scmp.ne.s32.totalorder %s68, %s82
      %p84 = scmp.eq.s32.totalorder %s23, 0
      %p85 = por %p83, %p84
      %s87 = sadd.s32 %s86, 1
      %p90 = scmp.eq.s32.totalorder %s17, 1
      %p91 = scmp.ne.s32.totalorder %s86, %s88
      %p92 = scmp.eq.s32.totalorder %s17, 0
      %p93 = por %p91, %p92
      %p94 = scmp.ne.s32.totalorder %s86, %s88
      %p95 = scmp.eq.s32.totalorder %s22, 1
      %p96 = por %p94, %p95
      %p97 = scmp.ne.s32.totalorder %s88, %s89
      %p98 = scmp.eq.s32.totalorder %s22, 0
      %p99 = por %p97, %p98
      %p100 = scmp.ne.s32.totalorder %s88, %s89
      %p101 = scmp.eq.s32.totalorder %s23, 1
      %p102 = por %p100, %p101
      %p104 = scmp.ne.s32.totalorder %s89, %s103
      %p105 = scmp.eq.s32.totalorder %s23, 0
      %p106 = por %p104, %p105
      %s108 = sadd.s32 %s107, 1
      %p111 = scmp.eq.s32.totalorder %s17, 1
      %p112 = scmp.ne.s32.totalorder %s107, %s109
      %p113 = scmp.eq.s32.totalorder %s17, 0
      %p114 = por %p112, %p113
      %p115 = scmp.ne.s32.totalorder %s107, %s109
      %p116 = scmp.eq.s32.totalorder %s22, 1
      %p117 = por %p115, %p116
      %p118 = scmp.ne.s32.totalorder %s109, %s110
      %p119 = scmp.eq.s32.totalorder %s22, 0
      %p120 = por %p118, %p119
      %p121 = scmp.ne.s32.totalorder %s109, %s110
      %p122 = scmp.eq.s32.totalorder %s23, 1
      %p123 = por %p121, %p122
      %p125 = scmp.ne.s32.totalorder %s110, %s124
      %p126 = scmp.eq.s32.totalorder %s23, 0
      %p127 = por %p125, %p126
      %s129 = sadd.s32 %s128, 1
      %p132 = scmp.eq.s32.totalorder %s17, 1
      %p133 = scmp.ne.s32.totalorder %s128, %s130
      %p134 = scmp.eq.s32.totalorder %s17, 0
      %p135 = por %p133, %p134
      %p136 = scmp.ne.s32.totalorder %s128, %s130
      %p137 = scmp.eq.s32.totalorder %s22, 1
      %p138 = por %p136, %p137
      %p139 = scmp.ne.s32.totalorder %s130, %s131
      %p140 = scmp.eq.s32.totalorder %s22, 0
      %p141 = por %p139, %p140
      %p142 = scmp.ne.s32.totalorder %s130, %s131
      %p143 = scmp.eq.s32.totalorder %s23, 1
      %p144 = por %p142, %p143
      %p146 = scmp.ne.s32.totalorder %s131, %s145
      %p147 = scmp.eq.s32.totalorder %s23, 0
      %p148 = por %p146, %p147
      %s149 = ssub.s32 %s24, %s36
      %p150 = scmp.eq.s32.totalorder %s149, 0
      %s152 = sadd.s32 %s151, 1
      %s153 = scalar_select %p150, %s151, %s152
      %p156 = pneg %p150
      %p157 = scmp.eq.s32.totalorder %s17, 1
      %p158 = por %p156, %p157
      %p159 = scmp.ne.s32.totalorder %s151, %s154
      %p160 = scmp.eq.s32.totalorder %s17, 0
      %p161 = por %p159, %p160
      %p162 = scmp.ne.s32.totalorder %s151, %s154
      %p163 = scmp.eq.s32.totalorder %s22, 1
      %p164 = por %p162, %p163
      %p165 = scmp.ne.s32.totalorder %s154, %s155
      %p166 = scmp.eq.s32.totalorder %s22, 0
      %p167 = por %p165, %p166
      %p168 = scmp.ne.s32.totalorder %s154, %s155
      %p169 = scmp.eq.s32.totalorder %s23, 1
      %p170 = por %p168, %p169
      %p172 = scmp.ne.s32.totalorder %s155, %s171
      %p173 = scmp.eq.s32.totalorder %s23, 0
      %p174 = por %p172, %p173
      %p175 = scmp.le.s32.totalorder 1, %s17
      %p176 = scmp.lt.s32.totalorder %s17, 3
      %p177 = pnand %p175, %p176
      %p178 = pneg %p177
      // Predicated region
      $region9: #{tpu_custom_call.1} parent=5 // pred_check
        _
      $region10: #{tpu_custom_call.1} parent=5 // pred_check_branch
        %180 = sbr.rel (%p177) target = $region12
      $region11: #{tpu_custom_call.1} parent=5 // pred_region
        %s181 = ssub.s32 %s17, 1
        // Predicated region
        $region13: #{tpu_custom_call.1} parent=11 // pred_check
          %p182 = pneg %p78
        $region14: #{tpu_custom_call.1} parent=11 // pred_check_branch
          %184 = sbr.rel (%p182) target = $region16
        $region15: #{tpu_custom_call.1} parent=11 // pred_region
          _
        $region16: #{tpu_custom_call.1} parent=11 // pred_fallthru
          _
        // Predicated region
        $region17: #{tpu_custom_call.1} parent=11 // pred_check
          %p185 = pneg %p99
        $region18: #{tpu_custom_call.1} parent=11 // pred_check_branch
          %187 = sbr.rel (%p185) target = $region20
        $region19: #{tpu_custom_call.1} parent=11 // pred_region
          _
        $region20: #{tpu_custom_call.1} parent=11 // pred_fallthru
          _
        // Predicated region
        $region21: #{tpu_custom_call.1} parent=11 // pred_check
          %p188 = pneg %p120
        $region22: #{tpu_custom_call.1} parent=11 // pred_check_branch
          %190 = sbr.rel (%p188) target = $region24
        $region23: #{tpu_custom_call.1} parent=11 // pred_region
          _
        $region24: #{tpu_custom_call.1} parent=11 // pred_fallthru
          _
        // Predicated region
        $region25: #{tpu_custom_call.1} parent=11 // pred_check
          %p191 = pneg %p141
        $region26: #{tpu_custom_call.1} parent=11 // pred_check_branch
          %193 = sbr.rel (%p191) target = $region28
        $region27: #{tpu_custom_call.1} parent=11 // pred_region
          _
        $region28: #{tpu_custom_call.1} parent=11 // pred_fallthru
          _
      $region12: #{tpu_custom_call.1} parent=5 // pred_fallthru
        _
      %p194 = scmp.lt.s32.totalorder %s17, 2
      // Predicated region
      $region29: #{tpu_custom_call.1} parent=5 // pred_check
        %p195 = pneg %p194
      $region30: #{tpu_custom_call.1} parent=5 // pred_check_branch
        %197 = sbr.rel (%p195) target = $region32
      $region31: #{tpu_custom_call.1} parent=5 // pred_region
        // Predicated region
        $region33: #{tpu_custom_call.1} parent=31 // pred_check
          %p198 = pneg %p51
        $region34: #{tpu_custom_call.1} parent=31 // pred_check_branch
          %200 = sbr.rel (%p198) target = $region36
        $region35: #{tpu_custom_call.1} parent=31 // pred_region
          %s201 = sand.u32 %s41, 1
          %s202 = scalar_lea.sflag [#allocation5], %s201
          %s203 = sand.u32 %s41, 1
          %s204 = smul.addr %s203, 48
          %s205 = scalar_lea.vmem [#allocation4], %s204
          %s206 = smul.u32 6, %s25
          %s208 = ssub.s32 768, 768
          %209 = vsyncadd %s202, %s208
          %s210 = smul.addr %s24, 6
          %s211 = sadd.s32 %s206, %s210
          %s212 = smul.addr %s211, 128
          %s213 = scalar_lea.hbm %s0, %s212
          %s215 = sshll.u32 %s205, 4
          %s216 = int_to_ptr.vmem [resolvable:$true] %s215
          %218 = dma.hbm_to_vmem [thread:$0]  %s213, 768, %s216, %s202
        $region36: #{tpu_custom_call.1} parent=31 // pred_fallthru
          _
      $region32: #{tpu_custom_call.1} parent=5 // pred_fallthru
        _
      %p219 = scmp.le.s32.totalorder 1, %s17
      %p220 = scmp.lt.s32.totalorder %s17, 3
      %p221 = pnand %p219, %p220
      %p222 = pneg %p221
      // Predicated region
      $region37: #{tpu_custom_call.1} parent=5 // pred_check
        _
      $region38: #{tpu_custom_call.1} parent=5 // pred_check_branch
        %224 = sbr.rel (%p221) target = $region40
      $region39: #{tpu_custom_call.1} parent=5 // pred_region
        %s225 = ssub.s32 %s17, 1
        %s226 = sand.u32 %s44, 1
        %s227 = scalar_lea.sflag [#allocation5], %s226
        %s228 = sand.u32 %s44, 1
        %s229 = smul.addr %s228, 48
        %s230 = scalar_lea.vmem [#allocation4], %s229
        // Predicated region
        $region41: #{tpu_custom_call.1} parent=39 // pred_check
          %p231 = pneg %p57
        $region42: #{tpu_custom_call.1} parent=39 // pred_check_branch
          %233 = sbr.rel (%p231) target = $region44
        $region43: #{tpu_custom_call.1} parent=39 // pred_region
          %234 = dma.done %s227, 768
        $region44: #{tpu_custom_call.1} parent=39 // pred_fallthru
          _
        %s235 = sand.u32 %s44, 1
        %s236 = scalar_lea.sflag [#allocation5], %s235
        %s237 = sand.u32 %s44, 1
        %s238 = smul.addr %s237, 48
        %s239 = scalar_lea.vmem [#allocation4], %s238
        %p240 = pneg %p57
        %p241 = pneg %p54
        %p242 = pneg %p78
        %p243 = pneg %p75
        %p244 = pneg %p99
        %p245 = pneg %p96
        %p246 = pneg %p120
        %p247 = pneg %p117
        %p248 = pneg %p141
        %p249 = pneg %p138
        %p250 = pneg %p167
        %p251 = pneg %p164
        %s252 = sand.u32 %s154, 1
        %s253 = scalar_lea.sflag [#allocation6], %s252
        %s254 = sand.u32 %s154, 1
        %s255 = scalar_lea.vmem [#allocation7], %s254
        %s256 = smul.u32 6, %s27
        %p257 = scmp.eq.s32.totalorder %s27, 0
        // Predicated region
        $region45: #{tpu_custom_call.1} parent=39 // pred_check
          %p258 = pneg %p257
        $region46: #{tpu_custom_call.1} parent=39 // pred_check_branch
          %260 = sbr.rel (%p258) target = $region48
        $region47: #{tpu_custom_call.1} parent=39 // pred_region
          %261 = vst [vmem:[#allocation2] sm:$0xff] 0.0
          %262 = vst [vmem:[#allocation3] sm:$0xff] -inf
          %v263 = vld [vmem:[#allocation2] sm:$0xff]
          %v264 = vld [vmem:[#allocation3] sm:$0xff]
          %v265 = vld [vmem:[%s230] sm:$0xff]
          %v266 = vadd.f32 %v263, %v265
          %v267 = vmax.f32 %v264, %v265
          %s268 = scalar_lea.vmem %s230, 8 [#allocation4]
          %v269 = vld [vmem:[%s268] sm:$0xff]
          %v270 = vadd.f32 %v266, %v269
          %v271 = vmax.f32 %v267, %v269
          %s272 = scalar_lea.vmem %s230, 16 [#allocation4]
          %v273 = vld [vmem:[%s272] sm:$0xff]
          %v274 = vadd.f32 %v270, %v273
          %v275 = vmax.f32 %v271, %v273
          %s276 = scalar_lea.vmem %s230, 24 [#allocation4]
          %v277 = vld [vmem:[%s276] sm:$0xff]
          %v278 = vadd.f32 %v274, %v277
          %v279 = vmax.f32 %v275, %v277
          %s280 = scalar_lea.vmem %s230, 32 [#allocation4]
          %v281 = vld [vmem:[%s280] sm:$0xff]
          %v282 = vadd.f32 %v278, %v281
          %v283 = vmax.f32 %v279, %v281
          %s284 = scalar_lea.vmem %s230, 40 [#allocation4]
          %v285 = vld [vmem:[%s284] sm:$0xff]
          %v286 = vlaneseq
          %v287 = vand.u32 %v286, 127
          %vm288 = vcmp.lt.s32.totalorder %v287, 80
          %v289 = vsel %vm288, %v285, 0.0
          %v290 = vadd.f32 %v282, %v289
          %v291 = vsel %vm288, %v285, -inf
          %v292 = vmax.f32 %v283, %v291
          %293 = vadd.xlane.f32.xlu0 %v290
          %v294 = vpop.xlane.xlu0 %293
          %v295 = vmul.f32 %v294, 0.0013888889
          %296 = vmax.xlane.f32.xlu0 %v292
          %v297 = vpop.xlane.xlu0 %296
          %v299 = vlaneseq
          %v300 = vshrl.u32 %v299, 7
          %v301 = vsub.s32 %v287, %v300
          %v302 = vrot.slane %v295, %v301
          %v305 = vlaneseq
          %v306 = vshrl.u32 %v305, 7
          %v307 = vsub.s32 %v287, %v306
          %v308 = vrot.slane %v297, %v307
          %vm310 = vcmask 1040384
          %v311 = vsel %vm310, %v302, %v308
          %v312 = vld [vmem:[%s1] sm:$0xff]
          %v313 = vld [vmem:[%s2] sm:$0x1]
          %v315 = vlaneseq
          %v316 = vshrl.u32 %v315, 7
          %v317 = vsub.s32 0, %v316
          %v318 = vrot.slane %v313, %v317
          %vm320 = vcmask 64512
          %v322 = vsel %vm320, %v311, 0
          %324 = vmatprep.subr.mxu0 0.0
          %325 = vmatpush1.msra.mxu0 %v312
          %326 = vmatprep.subr.mxu0 0.0
          %327 = vmatpush1.msra.mxu0 0.0
          %328 = vmatprep.subr.mxu0 0.0
          %329 = vmatpush1.msra.mxu0 0.0
          %330 = vmatprep.subr.mxu0 0.0
          %331 = vmatpush1.msra.mxu0 0.0
          %332 = vmatprep.subr.mxu0 0.0
          %333 = vmatpush1.msra.mxu0 0.0
          %334 = vmatprep.subr.mxu0 0.0
          %335 = vmatpush1.msra.mxu0 0.0
          %336 = vmatprep.subr.mxu0 0.0
          %337 = vmatpush1.msra.mxu0 0.0
          %338 = vmatprep.subr.mxu0 0.0
          %339 = vmatpush1.msra.mxu0 0.0
          %340 = vmatprep.subr.mxu0 0.0
          %341 = vmatpush1.msra.mxu0 0.0
          %342 = vmatprep.subr.mxu0 0.0
          %343 = vmatpush1.msra.mxu0 0.0
          %344 = vmatprep.subr.mxu0 0.0
          %345 = vmatpush1.msra.mxu0 0.0
          %346 = vmatprep.subr.mxu0 0.0
          %347 = vmatpush1.msra.mxu0 0.0
          %348 = vmatprep.subr.mxu0 0.0
          %349 = vmatpush1.msra.mxu0 0.0
          %350 = vmatprep.subr.mxu0 0.0
          %351 = vmatpush1.msra.mxu0 0.0
          %352 = vmatprep.subr.mxu0 0.0
          %353 = vmatpush1.msra.mxu0 0.0
          %354 = vmatprep.subr.mxu0 0.0
          %355 = vmatpush1.msra.mxu0 0.0
          %356 = vmatprep.subr.mxu0 0.0
          %357 = vmatpush1.msra.mxu0 0.0
          %358 = vmatprep.subr.mxu0 0.0
          %359 = vmatpush1.msra.mxu0 0.0
          %360 = vmatprep.subr.mxu0 0.0
          %361 = vmatpush1.msra.mxu0 0.0
          %362 = vmatprep.subr.mxu0 0.0
          %363 = vmatpush1.msra.mxu0 0.0
          %364 = vmatprep.subr.mxu0 0.0
          %365 = vmatpush1.msra.mxu0 0.0
          %366 = vmatprep.subr.mxu0 0.0
          %367 = vmatpush1.msra.mxu0 0.0
          %368 = vmatprep.subr.mxu0 0.0
          %369 = vmatpush1.msra.mxu0 0.0
          %370 = vmatprep.subr.mxu0 0.0
          %371 = vmatpush1.msra.mxu0 0.0
          %372 = vmatprep.subr.mxu0 0.0
          %373 = vmatpush1.msra.mxu0 0.0
          %374 = vmatprep.subr.mxu0 0.0
          %375 = vmatpush1.msra.mxu0 0.0
          %376 = vmatprep.subr.mxu0 0.0
          %377 = vmatpush1.msra.mxu0 0.0
          %378 = vmatprep.subr.mxu0 0.0
          %379 = vmatpush1.msra.mxu0 0.0
          %380 = vmatprep.subr.mxu0 0.0
          %381 = vmatpush1.msra.mxu0 0.0
          %382 = vmatprep.subr.mxu0 0.0
          %383 = vmatpush1.msra.mxu0 0.0
          %384 = vmatprep.subr.mxu0 0.0
          %385 = vmatpush1.msra.mxu0 0.0
          %386 = vmatprep.subr.mxu0 0.0
          %387 = vmatpush1.msra.mxu0 0.0
          %388 = vmatprep.mubr.f32.mxu0 0.0
          %389 = vmatmul.mubr.f32.gmra.mrb[0].mxu0 %v322
          %v390 = vpop.f32.mrb[0].mxu0
          %v391 = vadd.f32 %v318, %v390
          %v392 = vpop.f32.mrb[0].mxu0
          %393 = vdwg.mxu0
          %vm394 = vcmp.gt.f32.partialorder %v391, 0.0
          %v395 = vmul.f32 %v391, 0.2
          %v396 = vsel %vm394, %v391, %v395
          %v397 = vld [vmem:[%s3] sm:$0xf]
          %v398 = vld [vmem:[%s4] sm:$0x1]
          %v400 = vlaneseq
          %v401 = vshrl.u32 %v400, 7
          %v402 = vsub.s32 0, %v401
          %v403 = vrot.slane %v398, %v402
          %vm405 = vcmask 31744
          %v407 = vsel %vm405, %v396, 0
          %vm409 = vcmask 1043456
          %v411 = vsel %vm409, %v397, 0
          %413 = vmatprep.subr.mxu0 0.0
          %414 = vmatpush1.msra.mxu0 %v411
          %415 = vmatprep.subr.mxu0 0.0
          %416 = vmatpush1.msra.mxu0 0.0
          %417 = vmatprep.subr.mxu0 0.0
          %418 = vmatpush1.msra.mxu0 0.0
          %419 = vmatprep.subr.mxu0 0.0
          %420 = vmatpush1.msra.mxu0 0.0
          %421 = vmatprep.subr.mxu0 0.0
          %422 = vmatpush1.msra.mxu0 0.0
          %423 = vmatprep.subr.mxu0 0.0
          %424 = vmatpush1.msra.mxu0 0.0
          %425 = vmatprep.subr.mxu0 0.0
          %426 = vmatpush1.msra.mxu0 0.0
          %427 = vmatprep.subr.mxu0 0.0
          %428 = vmatpush1.msra.mxu0 0.0
          %429 = vmatprep.subr.mxu0 0.0
          %430 = vmatpush1.msra.mxu0 0.0
          %431 = vmatprep.subr.mxu0 0.0
          %432 = vmatpush1.msra.mxu0 0.0
          %433 = vmatprep.subr.mxu0 0.0
          %434 = vmatpush1.msra.mxu0 0.0
          %435 = vmatprep.subr.mxu0 0.0
          %436 = vmatpush1.msra.mxu0 0.0
          %437 = vmatprep.subr.mxu0 0.0
          %438 = vmatpush1.msra.mxu0 0.0
          %439 = vmatprep.subr.mxu0 0.0
          %440 = vmatpush1.msra.mxu0 0.0
          %441 = vmatprep.subr.mxu0 0.0
          %442 = vmatpush1.msra.mxu0 0.0
          %443 = vmatprep.subr.mxu0 0.0
          %444 = vmatpush1.msra.mxu0 0.0
          %445 = vmatprep.subr.mxu0 0.0
          %446 = vmatpush1.msra.mxu0 0.0
          %447 = vmatprep.subr.mxu0 0.0
          %448 = vmatpush1.msra.mxu0 0.0
          %449 = vmatprep.subr.mxu0 0.0
          %450 = vmatpush1.msra.mxu0 0.0
          %451 = vmatprep.subr.mxu0 0.0
          %452 = vmatpush1.msra.mxu0 0.0
          %453 = vmatprep.subr.mxu0 0.0
          %454 = vmatpush1.msra.mxu0 0.0
          %455 = vmatprep.subr.mxu0 0.0
          %456 = vmatpush1.msra.mxu0 0.0
          %457 = vmatprep.subr.mxu0 0.0
          %458 = vmatpush1.msra.mxu0 0.0
          %459 = vmatprep.subr.mxu0 0.0
          %460 = vmatpush1.msra.mxu0 0.0
          %461 = vmatprep.subr.mxu0 0.0
          %462 = vmatpush1.msra.mxu0 0.0
          %463 = vmatprep.subr.mxu0 0.0
          %464 = vmatpush1.msra.mxu0 0.0
          %465 = vmatprep.subr.mxu0 0.0
          %466 = vmatpush1.msra.mxu0 0.0
          %467 = vmatprep.subr.mxu0 0.0
          %468 = vmatpush1.msra.mxu0 0.0
          %469 = vmatprep.subr.mxu0 0.0
          %470 = vmatpush1.msra.mxu0 0.0
          %471 = vmatprep.subr.mxu0 0.0
          %472 = vmatpush1.msra.mxu0 0.0
          %473 = vmatprep.subr.mxu0 0.0
          %474 = vmatpush1.msra.mxu0 0.0
          %475 = vmatprep.subr.mxu0 0.0
          %476 = vmatpush1.msra.mxu0 0.0
          %477 = vmatprep.mubr.f32.mxu0 0.0
          %478 = vmatmul.mubr.f32.gmra.mrb[0].mxu0 %v407
          %v479 = vpop.f32.mrb[0].mxu0
          %v480 = vadd.f32 %v403, %v479
          %v481 = vpop.f32.mrb[0].mxu0
          %482 = vdwg.mxu0
          %v483 = vxor.u32 %v480, 2147483648
          %v484 = vmul.f32 %v483, 1.442695
          %v485 = vpow.pop %v484
          %v486 = vadd.f32 %v485, 1.0
          %v487 = vrcp.pop %v486
          %v488 = vmul.f32 1.0, %v487
          %v490 = vrot.slane %v488, 1
          %v492 = vadd.f32 %v488, %v490
          %vm493 = vcmask 57344
          %494 = vst.msk [vmem:[%s255] sm:$0x1] %vm493, %v492
        $region48: #{tpu_custom_call.1} parent=39 // pred_fallthru
          _
        %s495 = sand.u32 %s154, 1
        %s496 = scalar_lea.sflag [#allocation6], %s495
        %s497 = sand.u32 %s154, 1
        %s498 = scalar_lea.vmem [#allocation7], %s497
        // Predicated region
        $region49: #{tpu_custom_call.1} parent=39 // pred_check
          %p499 = pneg %p164
        $region50: #{tpu_custom_call.1} parent=39 // pred_check_branch
          %501 = sbr.rel (%p499) target = $region52
        $region51: #{tpu_custom_call.1} parent=39 // pred_region
          %s503 = ssub.s32 16, 16
          %504 = vsyncadd %s496, %s503
          %s505 = smul.addr %s26, 16
          %s506 = scalar_lea.hbm %s5, %s505
          %s508 = sshll.u32 %s498, 4
          %s509 = int_to_ptr.vmem [resolvable:$true] %s508
          %511 = dma.vmem_to_hbm [thread:$0]  %s509, 16, %s506, %s496
        $region52: #{tpu_custom_call.1} parent=39 // pred_fallthru
          _
      $region40: #{tpu_custom_call.1} parent=5 // pred_fallthru
        _
      %p512 = scmp.le.s32.totalorder 2, %s17
      // Predicated region
      $region53: #{tpu_custom_call.1} parent=5 // pred_check
        %p513 = pneg %p512
      $region54: #{tpu_custom_call.1} parent=5 // pred_check_branch
        %515 = sbr.rel (%p513) target = $region56
      $region55: #{tpu_custom_call.1} parent=5 // pred_region
        %s516 = ssub.s32 %s17, 2
        // Predicated region
        $region57: #{tpu_custom_call.1} parent=55 // pred_check
          %p517 = pneg %p170
        $region58: #{tpu_custom_call.1} parent=55 // pred_check_branch
          %519 = sbr.rel (%p517) target = $region60
        $region59: #{tpu_custom_call.1} parent=55 // pred_region
          %s520 = sand.u32 %s155, 1
          %s521 = scalar_lea.sflag [#allocation6], %s520
          %s522 = sand.u32 %s155, 1
          %s523 = scalar_lea.vmem [#allocation7], %s522
          %524 = dma.done %s521, 16
        $region60: #{tpu_custom_call.1} parent=55 // pred_fallthru
          _
      $region56: #{tpu_custom_call.1} parent=5 // pred_fallthru
        _
    $region6: #{tpu_custom_call.1} parent=1 // loop_footer
      %s21 = sadd.s32 1, %s17
    $region7: #{tpu_custom_call.1} parent=1 // loop_footer_branch
      %16 = sbr.rel target = $region3
    $region8: #{tpu_custom_call.1} parent=1 // loop_exit
      _
    %525 = vsyncpa [#allocation5], 1
    %s526 = scalar_lea.sflag [#allocation5], 1
    %527 = vsyncpa %s526, 1
    %528 = vsyncpa [#allocation6], 1
    %s529 = scalar_lea.sflag [#allocation6], 1
    %530 = vsyncpa %s529, 1

</llo_original>
